<compile_context>
chip_gen: v5e
topology: v5e:2x2
jax: 0.10.0
libtpu: 0.0.40
codegen_flags: <defaults>
</compile_context>

<pallas_src>
import functools
import math

import jax
import jax.numpy as jnp
from jax.experimental import pallas as pl
from jax.experimental.pallas import tpu as pltpu

WING_W = 10.0
WING_EPS = 2.0
_WING_C = WING_W * (1.0 - math.log(1.0 + WING_W / WING_EPS))
_INV_EPS = 1.0 / WING_EPS
_MAX_BATCH_TILE = 1024  # rows per grid step (multiple of 128)


def _pfld_loss_kernel(small_ref, lm_gt_ref, lms_ref, out_ref, *,
                      batch, block_rows):
    i = pl.program_id(1)
    steps = pl.num_programs(1)
    # Global (unclamped) batch-tile index; index_maps clamp, masks use this.
    t = pl.program_id(0) * steps + i
    row0 = t * block_rows

    # ---- validity masks (overflow / partial tiles run past the true batch) -
    valid_col = (row0 + jax.lax.broadcasted_iota(
        jnp.int32, (block_rows, 1), 0)) < batch                   # (tb, 1)
    valid_row = (row0 + jax.lax.broadcasted_iota(
        jnp.int32, (1, block_rows), 1)) < batch                   # (1, tb)
    valid_rowf = valid_row.astype(jnp.float32)

    # ---- tiny per-row inputs, lane-dense (w, tb); cast in-kernel -----------
    attr = small_ref[0].astype(jnp.float32)                       # (w, tb)
    euler = small_ref[1].astype(jnp.float32)                      # zero-padded
    ang = small_ref[2].astype(jnp.float32)                        # zero-padded
    # Zero-padded rows contribute attr==0 and 1-cos(0)==0, so plain sums
    # over the padded width are exact.
    weight_angle = jnp.sum(1.0 - jnp.cos(ang - euler), axis=0,
                           keepdims=True) + 1.0                   # (1, tb)
    weight_attr = jnp.sum(attr, axis=0, keepdims=True) + 1.0      # (1, tb)
    w_comb = jnp.where(valid_row, weight_angle * weight_attr, 0.0)  # (1, tb)

    # ---- wing loss over the flattened landmark coordinates -----------------
    x = lm_gt_ref[...].astype(jnp.float32) - lms_ref[...].astype(jnp.float32)
    abs_x = jnp.abs(x)
    losses = jnp.where(abs_x < WING_W,
                       WING_W * jnp.log(1.0 + abs_x * _INV_EPS),
                       abs_x - _WING_C)
    # Kill garbage rows of partial tiles (could hold Inf/NaN) before the MXU.
    losses = jnp.where(valid_col, losses, 0.0)                    # (tb, lm_w)

    # ---- batch reductions on the (otherwise idle) MXU -----------------------
    # Row 0: sum_r w_comb[r] * sum_c losses[r,c]  (weighted wing loss sum)
    # Row 1: sum_r mask[r]   * sum_c losses[r,c]  (plain wing loss sum)
    lhs = jnp.concatenate([w_comb, valid_rowf], axis=0)           # (2, tb)
    part = jnp.dot(lhs, losses, preferred_element_type=jnp.float32)  # (2, lm_w)
    sums = jnp.sum(part, axis=1, keepdims=True)                   # (2, 1)
    s_wl = sums[0:1, 0:1]                                         # (1, 1)
    s_l2 = sums[1:2, 0:1]                                         # (1, 1)
    s_wa = jnp.sum(jnp.where(valid_row, weight_angle, 0.0),
                   keepdims=True)                                 # (1, 1)

    lane = jax.lax.broadcasted_iota(jnp.int32, (1, 128), 1)
    partial = jnp.where(lane == 0, s_wl,
              jnp.where(lane == 1, s_l2,
              jnp.where(lane == 2, s_wa, 0.0)))                   # (1, 128)

    @pl.when(i == 0)
    def _():
        out_ref[...] = jnp.zeros_like(out_ref)

    out_ref[...] += partial


def pfld_loss(attribute_gt, landmark_gt, euler_angle_gt, angle, landmarks,
              train_batchsize=None, n_landmark=98,
              max_block_rows=_MAX_BATCH_TILE):
    # train_batchsize unused by the reference forward (signature parity only).
    del train_batchsize
    B = landmarks.shape[0]
    lm_w = landmarks.shape[-1]
    assert lm_w == 2 * n_landmark
    assert landmark_gt.shape == landmarks.shape
    n_attr = attribute_gt.shape[-1]

    # Pack the three tiny per-row inputs lane-dense into one (3, w, B) array
    # (batch on the lane axis) -> one small DMA per step and dense VPU/EUP
    # work in-kernel.  Zero padding of the width is inert (see kernel).
    w = max(n_attr, euler_angle_gt.shape[-1], angle.shape[-1])
    small_dtype = jnp.result_type(attribute_gt.dtype, euler_angle_gt.dtype,
                                  angle.dtype)

    def _pad_t(a):
        a = a.astype(small_dtype)
        pad = w - a.shape[-1]
        if pad:
            a = jnp.pad(a, ((0, 0), (0, pad)))
        return a.T                                                # (w, B)

    small = jnp.stack([_pad_t(attribute_gt), _pad_t(euler_angle_gt),
                       _pad_t(angle)], axis=0)                    # (3, w, B)

    # ---- batch tiling: big tiles, and >=2 tiles when feasible so both
    # TensorCores on dual-core chips (v7x) get work. -------------------------
    mbr = max(128, (max_block_rows // 128) * 128)
    if B < 256:
        tb, nb = B, 1
    else:
        tb = min(mbr, pl.cdiv(pl.cdiv(B, 2), 128) * 128)
        nb = pl.cdiv(B, tb)
    ncores = 2 if nb >= 2 else 1
    steps = pl.cdiv(nb, ncores)

    def tile_idx(c, i):
        # Clamp overflow tiles (odd tile count on the core split); the kernel
        # masks them out entirely so clamped duplicate data contributes 0.
        return jnp.minimum(c * steps + i, nb - 1)

    kernel = functools.partial(_pfld_loss_kernel, batch=B, block_rows=tb)
    out = pl.pallas_call(
        kernel,
        out_shape=jax.ShapeDtypeStruct((ncores, 128), jnp.float32),
        grid=(ncores, steps),
        in_specs=[
            pl.BlockSpec((3, w, tb), lambda c, i: (0, 0, tile_idx(c, i))),
            pl.BlockSpec((tb, lm_w), lambda c, i: (tile_idx(c, i), 0)),
            pl.BlockSpec((tb, lm_w), lambda c, i: (tile_idx(c, i), 0)),
        ],
        out_specs=pl.BlockSpec((1, 128), lambda c, i: (c, 0)),
        compiler_params=pltpu.CompilerParams(
            dimension_semantics=("parallel", "arbitrary"),
            vmem_limit_bytes=32 * 1024 * 1024),
    )(small, landmark_gt, landmarks)

    # Sum the per-core partial rows, then take the batch mean.
    totals = jnp.sum(out, axis=0)
    scale = 1.0 / B
    return totals[0] * scale, totals[1] * scale, totals[2] * scale


def _reference(attribute_gt, landmark_gt, euler_angle_gt, angle, landmarks):
    weight_angle = jnp.sum(1.0 - jnp.cos(angle - euler_angle_gt), axis=1) + 1.0
    weight_attr = jnp.sum(attribute_gt.astype(jnp.float32), axis=1) + 1.0
    x = landmark_gt.astype(jnp.float32) - landmarks.astype(jnp.float32)
    abs_x = jnp.abs(x)
    losses = jnp.where(abs_x < WING_W,
                       WING_W * jnp.log(1.0 + abs_x / WING_EPS),
                       abs_x - _WING_C)
    l2 = jnp.sum(losses, axis=1)
    return (jnp.mean(weight_angle * weight_attr * l2), jnp.mean(l2),
            jnp.mean(weight_angle))


if __name__ == "__main__":
    def make_inputs(key, B, n_lm=98, n_attr=6):
        k1, k2, k3, k4, k5 = jax.random.split(key, 5)
        attribute_gt = (jax.random.uniform(k1, (B, n_attr)) > 0.5).astype(
            jnp.float32)
        landmark_gt = jax.random.uniform(k2, (B, 2 * n_lm), dtype=jnp.float32)
        euler_angle_gt = jax.random.normal(k3, (B, 3), dtype=jnp.float32)
        angle = jax.random.normal(k4, (B, 3), dtype=jnp.float32)
        # Mix of small/large errors so both wing-loss branches are exercised.
        landmarks = landmark_gt + 20.0 * jax.random.normal(
            k5, (B, 2 * n_lm), dtype=jnp.float32)
        return attribute_gt, landmark_gt, euler_angle_gt, angle, landmarks

    key = jax.random.PRNGKey(0)

    # Case 1: small batch -> single tile, single-core grid.
    args1 = make_inputs(key, 8)
    out1 = jax.block_until_ready(
        pfld_loss(*args1, train_batchsize=8, n_landmark=98))
    ref1 = _reference(*args1)

    # Case 2: multi-tile grid with the 2-way core split, a partial tile and a
    # fully-masked (clamped) overflow tile, exercising the accumulator path.
    args2 = make_inputs(jax.random.PRNGKey(1), 300)
    out2 = jax.block_until_ready(
        pfld_loss(*args2, train_batchsize=300, n_landmark=98,
                  max_block_rows=128))
    ref2 = _reference(*args2)

    for got, want in list(zip(out1, ref1)) + list(zip(out2, ref2)):
        g, wv = float(got), float(want)
        assert abs(g - wv) <= 2e-3 * max(1.0, abs(wv)), (g, wv)

    print("KERNEL_OK")
</pallas_src>

<mosaic_0001>
module attributes {stable_mosaic.version = 11 : i64} {
  func.func @_pfld_loss_kernel(%arg0: i32, %arg1: i32, %arg2: memref<3x6x8xf32, #tpu.memory_space<vmem>>, %arg3: memref<8x196xf32, #tpu.memory_space<vmem>>, %arg4: memref<8x196xf32, #tpu.memory_space<vmem>>, %arg5: memref<1x128xf32, #tpu.memory_space<vmem>>) attributes {dimension_semantics = [#tpu.dimension_semantics<parallel>, #tpu.dimension_semantics<arbitrary>], iteration_bounds = array<i64: 1, 1>, scalar_prefetch = 0 : i64, scratch_operands = 0 : i64, tpu.core_type = #tpu.core_type<tc>, window_params = [{transform_indices = @transform_0, window_bounds = array<i64: 3, 6, 8>}, {transform_indices = @transform_1, window_bounds = array<i64: 8, 196>}, {transform_indices = @transform_2, window_bounds = array<i64: 8, 196>}, {transform_indices = @transform_3, window_bounds = array<i64: 1, 128>}]} {
    %c1_i32 = arith.constant 1 : i32
    %0 = arith.muli %arg0, %c1_i32 : i32
    %1 = arith.addi %0, %arg1 : i32
    %c8_i32 = arith.constant 8 : i32
    %2 = arith.muli %1, %c8_i32 : i32
    %3 = tpu.iota {dimensions = array<i32: 0>} : vector<8x1xi32>
    %4 = vector.broadcast %2 : i32 to vector<8x1xi32>
    %5 = arith.addi %4, %3 : vector<8x1xi32>
    %c8_i32_0 = arith.constant 8 : i32
    %6 = vector.broadcast %c8_i32_0 : i32 to vector<8x1xi32>
    %7 = arith.cmpi slt, %5, %6 : vector<8x1xi32>
    %8 = tpu.iota {dimensions = array<i32: 1>} : vector<1x8xi32>
    %9 = vector.broadcast %2 : i32 to vector<1x8xi32>
    %10 = arith.addi %9, %8 : vector<1x8xi32>
    %c8_i32_1 = arith.constant 8 : i32
    %11 = vector.broadcast %c8_i32_1 : i32 to vector<1x8xi32>
    %12 = arith.cmpi slt, %10, %11 : vector<1x8xi32>
    %13 = arith.extui %12 : vector<1x8xi1> to vector<1x8xi32>
    %14 = arith.sitofp %13 : vector<1x8xi32> to vector<1x8xf32>
    %c0 = arith.constant 0 : index
    %c0_2 = arith.constant 0 : index
    %c0_3 = arith.constant 0 : index
    %15 = vector.load %arg2[%c0, %c0_2, %c0_3] : memref<3x6x8xf32, #tpu.memory_space<vmem>>, vector<1x6x8xf32>
    %16 = vector.shape_cast %15 : vector<1x6x8xf32> to vector<6x8xf32>
    %c1 = arith.constant 1 : index
    %c0_4 = arith.constant 0 : index
    %c0_5 = arith.constant 0 : index
    %17 = vector.load %arg2[%c1, %c0_4, %c0_5] : memref<3x6x8xf32, #tpu.memory_space<vmem>>, vector<1x6x8xf32>
    %18 = vector.shape_cast %17 : vector<1x6x8xf32> to vector<6x8xf32>
    %c2 = arith.constant 2 : index
    %c0_6 = arith.constant 0 : index
    %c0_7 = arith.constant 0 : index
    %19 = vector.load %arg2[%c2, %c0_6, %c0_7] : memref<3x6x8xf32, #tpu.memory_space<vmem>>, vector<1x6x8xf32>
    %20 = vector.shape_cast %19 : vector<1x6x8xf32> to vector<6x8xf32>
    %21 = arith.subf %20, %18 : vector<6x8xf32>
    %22 = math.cos %21 : vector<6x8xf32>
    %cst = arith.constant 1.000000e+00 : f32
    %23 = vector.broadcast %cst : f32 to vector<6x8xf32>
    %24 = arith.subf %23, %22 : vector<6x8xf32>
    %cst_8 = arith.constant dense<0.000000e+00> : vector<8xf32>
    %25 = vector.multi_reduction <add>, %24, %cst_8 [0] : vector<6x8xf32> to vector<8xf32>
    %26 = vector.shape_cast %25 : vector<8xf32> to vector<1x8xf32>
    %cst_9 = arith.constant 1.000000e+00 : f32
    %27 = vector.broadcast %cst_9 : f32 to vector<1x8xf32>
    %28 = arith.addf %26, %27 : vector<1x8xf32>
    %cst_10 = arith.constant dense<0.000000e+00> : vector<8xf32>
    %29 = vector.multi_reduction <add>, %16, %cst_10 [0] : vector<6x8xf32> to vector<8xf32>
    %30 = vector.shape_cast %29 : vector<8xf32> to vector<1x8xf32>
    %cst_11 = arith.constant 1.000000e+00 : f32
    %31 = vector.broadcast %cst_11 : f32 to vector<1x8xf32>
    %32 = arith.addf %30, %31 : vector<1x8xf32>
    %33 = arith.mulf %28, %32 : vector<1x8xf32>
    %cst_12 = arith.constant 0.000000e+00 : f32
    %34 = vector.broadcast %cst_12 : f32 to vector<1x8xf32>
    %35 = arith.select %12, %33, %34 : vector<1x8xi1>, vector<1x8xf32>
    %c0_13 = arith.constant 0 : index
    %c0_14 = arith.constant 0 : index
    %36 = vector.load %arg3[%c0_13, %c0_14] : memref<8x196xf32, #tpu.memory_space<vmem>>, vector<8x196xf32>
    %c0_15 = arith.constant 0 : index
    %c0_16 = arith.constant 0 : index
    %37 = vector.load %arg4[%c0_15, %c0_16] : memref<8x196xf32, #tpu.memory_space<vmem>>, vector<8x196xf32>
    %38 = arith.subf %36, %37 : vector<8x196xf32>
    %39 = math.absf %38 : vector<8x196xf32>
    %cst_17 = arith.constant 1.000000e+01 : f32
    %40 = vector.broadcast %cst_17 : f32 to vector<8x196xf32>
    %41 = arith.cmpf olt, %39, %40 : vector<8x196xf32>
    %cst_18 = arith.constant 5.000000e-01 : f32
    %42 = vector.broadcast %cst_18 : f32 to vector<8x196xf32>
    %43 = arith.mulf %39, %42 : vector<8x196xf32>
    %cst_19 = arith.constant 1.000000e+00 : f32
    %44 = vector.broadcast %cst_19 : f32 to vector<8x196xf32>
    %45 = arith.addf %44, %43 : vector<8x196xf32>
    %46 = math.log %45 : vector<8x196xf32>
    %cst_20 = arith.constant 1.000000e+01 : f32
    %47 = vector.broadcast %cst_20 : f32 to vector<8x196xf32>
    %48 = arith.mulf %47, %46 : vector<8x196xf32>
    %cst_21 = arith.constant -7.9175949 : f32
    %49 = vector.broadcast %cst_21 : f32 to vector<8x196xf32>
    %50 = arith.subf %39, %49 : vector<8x196xf32>
    %51 = arith.select %41, %48, %50 : vector<8x196xi1>, vector<8x196xf32>
    %cst_22 = arith.constant 0.000000e+00 : f32
    %52 = vector.shape_cast %7 : vector<8x1xi1> to vector<8x1xi1>
    %53 = vector.broadcast %52 : vector<8x1xi1> to vector<8x196xi1>
    %54 = vector.broadcast %cst_22 : f32 to vector<8x196xf32>
    %55 = arith.select %53, %51, %54 : vector<8x196xi1>, vector<8x196xf32>
    %56 = tpu.concatenate %35, %14 in 0 : vector<1x8xf32>, vector<1x8xf32> -> vector<2x8xf32>
    %cst_23 = arith.constant dense<0.000000e+00> : vector<2x196xf32>
    %57 = tpu.matmul %56, %55, %cst_23 {dimension_numbers = #tpu.dot_dimension_numbers<[1], [0], [0], [1], [0, 0, 1, 1], [], []>} : vector<2x8xf32>, vector<8x196xf32>, vector<2x196xf32> -> vector<2x196xf32>
    %cst_24 = arith.constant dense<0.000000e+00> : vector<2xf32>
    %58 = vector.multi_reduction <add>, %57, %cst_24 [1] : vector<2x196xf32> to vector<2xf32>
    %59 = vector.shape_cast %58 : vector<2xf32> to vector<2x1xf32>
    %60 = vector.extract_strided_slice %59 {offsets = [0, 0], sizes = [1, 1], strides = [1, 1]} : vector<2x1xf32> to vector<1x1xf32>
    %61 = vector.extract_strided_slice %59 {offsets = [1, 0], sizes = [1, 1], strides = [1, 1]} : vector<2x1xf32> to vector<1x1xf32>
    %cst_25 = arith.constant 0.000000e+00 : f32
    %62 = vector.broadcast %cst_25 : f32 to vector<1x8xf32>
    %63 = arith.select %12, %28, %62 : vector<1x8xi1>, vector<1x8xf32>
    %64 = vector.shape_cast %63 : vector<1x8xf32> to vector<1x1x8xf32>
    %cst_26 = arith.constant dense<0.000000e+00> : vector<1xf32>
    %65 = vector.multi_reduction <add>, %64, %cst_26 [1, 2] : vector<1x1x8xf32> to vector<1xf32>
    %66 = vector.shape_cast %65 : vector<1xf32> to vector<1x1x1xf32>
    %67 = vector.extract %66[0, 0, 0] : f32 from vector<1x1x1xf32>
    %68 = vector.broadcast %67 : f32 to vector<1x1xf32>
    %69 = tpu.iota {dimensions = array<i32: 1>} : vector<1x128xi32>
    %c0_i32 = arith.constant 0 : i32
    %70 = vector.broadcast %c0_i32 : i32 to vector<1x128xi32>
    %71 = arith.cmpi eq, %69, %70 : vector<1x128xi32>
    %c1_i32_27 = arith.constant 1 : i32
    %72 = vector.broadcast %c1_i32_27 : i32 to vector<1x128xi32>
    %73 = arith.cmpi eq, %69, %72 : vector<1x128xi32>
    %c2_i32 = arith.constant 2 : i32
    %74 = vector.broadcast %c2_i32 : i32 to vector<1x128xi32>
    %75 = arith.cmpi eq, %69, %74 : vector<1x128xi32>
    %cst_28 = arith.constant 0.000000e+00 : f32
    %76 = vector.shape_cast %68 : vector<1x1xf32> to vector<1x1xf32>
    %77 = vector.broadcast %76 : vector<1x1xf32> to vector<1x128xf32>
    %78 = vector.broadcast %cst_28 : f32 to vector<1x128xf32>
    %79 = arith.select %75, %77, %78 : vector<1x128xi1>, vector<1x128xf32>
    %80 = vector.shape_cast %61 : vector<1x1xf32> to vector<1x1xf32>
    %81 = vector.broadcast %80 : vector<1x1xf32> to vector<1x128xf32>
    %82 = arith.select %73, %81, %79 : vector<1x128xi1>, vector<1x128xf32>
    %83 = vector.shape_cast %60 : vector<1x1xf32> to vector<1x1xf32>
    %84 = vector.broadcast %83 : vector<1x1xf32> to vector<1x128xf32>
    %85 = arith.select %71, %84, %82 : vector<1x128xi1>, vector<1x128xf32>
    %c0_i32_29 = arith.constant 0 : i32
    %86 = arith.cmpi eq, %arg1, %c0_i32_29 : i32
    %87 = arith.extui %86 : i1 to i32
    %c0_i32_30 = arith.constant 0 : i32
    %88 = arith.cmpi ne, %87, %c0_i32_30 : i32
    scf.if %88 {
      %cst_35 = arith.constant 0.000000e+00 : f32
      %92 = vector.broadcast %cst_35 : f32 to vector<1x128xf32>
      %c0_36 = arith.constant 0 : index
      %c0_37 = arith.constant 0 : index
      %93 = vector.load %arg5[%c0_36, %c0_37] : memref<1x128xf32, #tpu.memory_space<vmem>>, vector<1x128xf32>
      tpu.vector_store %arg5[%c0_36, %c0_37], %92 {strides = array<i32>} : memref<1x128xf32, #tpu.memory_space<vmem>>, vector<1x128xf32>,
    } else {
    }
    %c0_31 = arith.constant 0 : index
    %c0_32 = arith.constant 0 : index
    %89 = vector.load %arg5[%c0_31, %c0_32] : memref<1x128xf32, #tpu.memory_space<vmem>>, vector<1x128xf32>
    %90 = arith.addf %89, %85 : vector<1x128xf32>
    %c0_33 = arith.constant 0 : index
    %c0_34 = arith.constant 0 : index
    %91 = vector.load %arg5[%c0_33, %c0_34] : memref<1x128xf32, #tpu.memory_space<vmem>>, vector<1x128xf32>
    tpu.vector_store %arg5[%c0_33, %c0_34], %90 {strides = array<i32>} : memref<1x128xf32, #tpu.memory_space<vmem>>, vector<1x128xf32>,
    return
  }
  func.func @transform_0(%arg0: i32, %arg1: i32) -> (i32, i32, i32) {
    %c1_i32 = arith.constant 1 : i32
    %0 = arith.muli %arg0, %c1_i32 : i32
    %1 = arith.addi %0, %arg1 : i32
    %c0_i32 = arith.constant 0 : i32
    %2 = arith.minsi %1, %c0_i32 : i32
    %c0_i32_0 = arith.constant 0 : i32
    %c0_i32_1 = arith.constant 0 : i32
    %c0_i32_2 = arith.constant 0 : i32
    return %c0_i32_0, %c0_i32_1, %2 : i32, i32, i32
  }
  func.func @transform_1(%arg0: i32, %arg1: i32) -> (i32, i32) {
    %c1_i32 = arith.constant 1 : i32
    %0 = arith.muli %arg0, %c1_i32 : i32
    %1 = arith.addi %0, %arg1 : i32
    %c0_i32 = arith.constant 0 : i32
    %2 = arith.minsi %1, %c0_i32 : i32
    %c0_i32_0 = arith.constant 0 : i32
    %c0_i32_1 = arith.constant 0 : i32
    return %2, %c0_i32_0 : i32, i32
  }
  func.func @transform_2(%arg0: i32, %arg1: i32) -> (i32, i32) {
    %c1_i32 = arith.constant 1 : i32
    %0 = arith.muli %arg0, %c1_i32 : i32
    %1 = arith.addi %0, %arg1 : i32
    %c0_i32 = arith.constant 0 : i32
    %2 = arith.minsi %1, %c0_i32 : i32
    %c0_i32_0 = arith.constant 0 : i32
    %c0_i32_1 = arith.constant 0 : i32
    return %2, %c0_i32_0 : i32, i32
  }
  func.func @transform_3(%arg0: i32, %arg1: i32) -> (i32, i32) {
    %c0_i32 = arith.constant 0 : i32
    %c0_i32_0 = arith.constant 0 : i32
    return %arg0, %c0_i32 : i32, i32
  }
}

</mosaic_0001>

<llo_original>
// kernel: tpu_custom_call.1
$region0: #{tpu_custom_call.1}
  #allocation0 [shape = 'u32[]', space=smem, size = 0x4, offset = 0x4, fixed_abs, tag = 'smem constant byte address 0x4 - core index']
  #allocation1 [shape = 'u32[72,128]{1,0:T(1,128)}', space=vmem, size = 0x9000, scoped, tag = 'internal scratch']
  %s0 = inlined_call_operand.hbm [shape: f32[3,6,8], index: 0, kind: input, shape index: {}]
  %s1 = inlined_call_operand.hbm [shape: f32[8,196], index: 1, kind: input, shape index: {}]
  %s2 = inlined_call_operand.hbm [shape: f32[8,196], index: 2, kind: input, shape index: {}]
  %s3 = inlined_call_operand.hbm [shape: f32[1,128], index: 3, kind: output, shape index: {}]
  %s4 = sld [smem:[#allocation0]]
  $region38: #{tpu_custom_call.1} parent=0
    _
  %s6 = ssub.s32 1, %s4
  %s7 = scalar_select 0, %s6, %s4
  $region1: #{tpu_custom_call.1} parent=0
    #allocation2 [shape = 'u8[12288]{0}', space=vmem, size = 0x3000, scoped, tag = 'input window, operand 0, single buffered']
    #allocation3 [shape = 's32[1]{0}', space=sflag, size = 0x4, scoped, tag = 'scoped memory for tpu_custom_call.1']
    #allocation4 [shape = 's32[1]{0}', space=sflag, size = 0x4, scoped, tag = 'scoped memory for tpu_custom_call.1']
    #allocation5 [shape = 'u8[8192]{0}', space=vmem, size = 0x2000, scoped, tag = 'input window, operand 1, single buffered']
    #allocation6 [shape = 's32[1]{0}', space=sflag, size = 0x4, scoped, tag = 'scoped memory for tpu_custom_call.1']
    #allocation7 [shape = 'u8[8192]{0}', space=vmem, size = 0x2000, scoped, tag = 'input window, operand 2, single buffered']
    #allocation8 [shape = 'u8[512]{0}', space=vmem, size = 0x400, scoped, tag = 'output window, operand 0, single buffered']
    %8 = vsyncpa [#allocation3], 0
    %9 = vsyncpa [#allocation6], 0
    %10 = vsyncpa [#allocation4], 0
    // Predicated region
    $region2: #{tpu_custom_call.1} parent=1 // pred_check
      _
    $region3: #{tpu_custom_call.1} parent=1 // pred_check_branch
      %12 = sbr.rel (0) target = $region5
    $region4: #{tpu_custom_call.1} parent=1 // pred_region
      %s13 = sadd.s32 0, 0
      %p14 = scmp.lt.s32.totalorder %s13, 0
      %s15 = scalar_select %p14, %s13, 0
      %17 = vsyncadd [#allocation3], 0
      %s18 = smul.addr %s15, 8
      %s19 = scalar_lea.hbm %s0, %s18
      %s20 = sshll.u32 %s19, 4
      %s21 = int_to_ptr.hbm [resolvable:$true] %s20
      %s22 = sshll.u32 [#allocation2], 4
      %s23 = int_to_ptr.vmem [resolvable:$true] %s22
      %28 = dma.hbm_to_vmem [thread:$0]  %s21, 384, %s23, [#allocation3], 128, 128, 8
    $region5: #{tpu_custom_call.1} parent=1 // pred_fallthru
      _
    // Predicated region
    $region6: #{tpu_custom_call.1} parent=1 // pred_check
      _
    $region7: #{tpu_custom_call.1} parent=1 // pred_check_branch
      %30 = sbr.rel (0) target = $region9
    $region8: #{tpu_custom_call.1} parent=1 // pred_region
      %s31 = sadd.s32 0, 0
      %p32 = scmp.lt.s32.totalorder %s31, 0
      %s33 = scalar_select %p32, %s31, 0
      %35 = vsyncadd [#allocation6], 0
      %s36 = smul.addr %s33, 2
      %s37 = smul.addr %s36, 8
      %s38 = scalar_lea.hbm %s1, %s37
      %s40 = sshll.u32 %s38, 4
      %s41 = int_to_ptr.hbm [resolvable:$true] %s40
      %s42 = sshll.u32 [#allocation5], 4
      %s43 = int_to_ptr.vmem [resolvable:$true] %s42
      %45 = dma.hbm_to_vmem [thread:$0]  %s41, 256, %s43, [#allocation6]
    $region9: #{tpu_custom_call.1} parent=1 // pred_fallthru
      _
    // Predicated region
    $region10: #{tpu_custom_call.1} parent=1 // pred_check
      _
    $region11: #{tpu_custom_call.1} parent=1 // pred_check_branch
      %47 = sbr.rel (0) target = $region13
    $region12: #{tpu_custom_call.1} parent=1 // pred_region
      %s48 = sadd.s32 0, 0
      %p49 = scmp.lt.s32.totalorder %s48, 0
      %s50 = scalar_select %p49, %s48, 0
      %52 = vsyncadd [#allocation6], 0
      %s53 = smul.addr %s50, 2
      %s54 = smul.addr %s53, 8
      %s55 = scalar_lea.hbm %s2, %s54
      %s57 = sshll.u32 %s55, 4
      %s58 = int_to_ptr.hbm [resolvable:$true] %s57
      %s59 = sshll.u32 [#allocation7], 4
      %s60 = int_to_ptr.vmem [resolvable:$true] %s59
      %62 = dma.hbm_to_vmem [thread:$0]  %s58, 256, %s60, [#allocation6]
    $region13: #{tpu_custom_call.1} parent=1 // pred_fallthru
      _
    // Predicated region
    $region14: #{tpu_custom_call.1} parent=1 // pred_check
      _
    $region15: #{tpu_custom_call.1} parent=1 // pred_check_branch
      %64 = sbr.rel (0) target = $region17
    $region16: #{tpu_custom_call.1} parent=1 // pred_region
      %66 = dma.done [#allocation3], 384
    $region17: #{tpu_custom_call.1} parent=1 // pred_fallthru
      _
    // Predicated region
    $region18: #{tpu_custom_call.1} parent=1 // pred_check
      _
    $region19: #{tpu_custom_call.1} parent=1 // pred_check_branch
      %68 = sbr.rel (0) target = $region21
    $region20: #{tpu_custom_call.1} parent=1 // pred_region
      %70 = dma.done [#allocation6], 256
    $region21: #{tpu_custom_call.1} parent=1 // pred_fallthru
      _
    // Predicated region
    $region22: #{tpu_custom_call.1} parent=1 // pred_check
      _
    $region23: #{tpu_custom_call.1} parent=1 // pred_check_branch
      %72 = sbr.rel (0) target = $region25
    $region24: #{tpu_custom_call.1} parent=1 // pred_region
      %74 = dma.done [#allocation6], 256
    $region25: #{tpu_custom_call.1} parent=1 // pred_fallthru
      _
    %s75 = sadd.s32 0, 0
    %p76 = scmp.lt.s32.totalorder %s75, 0
    %s77 = scalar_select %p76, %s75, 0
    %s78 = sadd.s32 0, 0
    %p79 = scmp.lt.s32.totalorder %s78, 0
    %s80 = scalar_select %p79, %s78, 0
    %s81 = sadd.s32 0, 0
    %p82 = scmp.lt.s32.totalorder %s81, 0
    %s83 = scalar_select %p82, %s81, 0
    %s84 = sadd.s32 0, 0
    %s85 = smul.u32 %s84, 8
    %v86 = vlaneseq
    %v87 = vshrl.u32 %v86, 7
    %v88 = vstv %s85
    %v89 = vadd.s32 %v88, %v87
    %vm90 = vcmp.lt.s32.totalorder %v89, 8
    %v91 = vlaneseq
    %v92 = vand.u32 %v91, 127
    %v93 = vadd.s32 %v88, %v92
    %vm94 = vcmp.lt.s32.totalorder %v93, 8
    %v95 = vsel %vm94, 1, 0
    %v96 = vcvt.s32.f32 %v95
    %v97 = vld [vmem:[#allocation2] sm:$0x3f]
    %s98 = scalar_lea.vmem [#allocation2], 8
    %v99 = vld [vmem:[%s98] sm:$0x3f]
    %s100 = scalar_lea.vmem [#allocation2], 16
    %v101 = vld [vmem:[%s100] sm:$0x3f]
    %v102 = vsub.f32 %v101, %v99
    %v103 = vand.u32 2147483647, %v102
    %vm104 = vcmp.le.f32.partialorder %v103, 0.7853982
    %vm105 = vcmp.lt.s32.totalorder %v102, 0
    %v106 = vand.u32 %v102, 2139095040
    %v107 = vshrl.u32 %v106, 23
    %v108 = vsub.s32 %v107, 127
    %v109 = vand.u32 2147483647, %v102
    %v110 = vand.u32 %v109, 8388607
    %v111 = vor.u32 %v110, 8388608
    %v112 = vsub.s32 0, %v111
    %v113 = vadd.s32 %v108, 1
    %vm114 = vcmp.gt.s32.totalorder %v113, 0
    %v115 = vsel %vm114, %v113, 0
    %v116 = vshrl.u32 %v115, 5
    %v117 = vand.u32 %v115, 31
    %v118 = vsub.s32 32, %v117
    %v119 = vshrl.u32 683565275, %v118
    %v120 = vshll.u32 683565275, %v117
    %v121 = vshrl.u32 2475754826, %v118
    %v122 = vor.u32 %v120, %v121
    %v123 = vshll.u32 2475754826, %v117
    %v124 = vshrl.u32 2131351028, %v118
    %v125 = vor.u32 %v123, %v124
    %v126 = vshll.u32 2131351028, %v117
    %v127 = vshrl.u32 2102212464, %v118
    %v128 = vor.u32 %v126, %v127
    %v129 = vshll.u32 2102212464, %v117
    %v130 = vshrl.u32 920167782, %v118
    %v131 = vor.u32 %v129, %v130
    %v132 = vshll.u32 920167782, %v117
    %v133 = vshrl.u32 1326507024, %v118
    %v134 = vor.u32 %v132, %v133
    %vm135 = vcmp.lt.s32.totalorder %v116, 1
    %vm136 = vcmp.lt.s32.totalorder %v116, 2
    %vm137 = vcmp.lt.s32.totalorder %v116, 3
    %vm138 = vcmp.lt.s32.totalorder %v116, 4
    %v139 = vsel %vm135, %v119, %v122
    %v140 = vsel %vm138, %v128, 2102212464
    %v141 = vsel %vm137, %v125, %v140
    %v142 = vsel %vm136, %v139, %v141
    %v143 = vsel %vm135, %v122, %v125
    %v144 = vsel %vm138, %v131, 920167782
    %v145 = vsel %vm137, %v128, %v144
    %v146 = vsel %vm136, %v143, %v145
    %v147 = vsel %vm135, %v125, %v128
    %v148 = vsel %vm138, %v134, 1326507024
    %v149 = vsel %vm137, %v131, %v148
    %v150 = vsel %vm136, %v147, %v149
    %v151 = vshll.u32 %v111, 8
    %v152 = vand.u32 %v151, 65535
    %v153 = vshrl.u32 %v151, 16
    %v154 = vand.u32 %v150, 65535
    %v155 = vshrl.u32 %v150, 16
    %v156 = vmul.u32 %v152, %v154
    %v157 = vmul.u32 %v152, %v155
    %v158 = vmul.u32 %v153, %v154
    %v159 = vmul.u32 %v153, %v155
    %v160 = vshll.u32 %v157, 16
    %v161 = vshrl.u32 %v157, 16
    %v162 = vshll.u32 %v158, 16
    %v163 = vshrl.u32 %v158, 16
    %vm164 = vc.u32 %v156, %v160
    %v165 = vsel %vm164, 1, 0
    %v166 = vadd.s32 %v156, %v160
    %v167 = vadd.s32 %v159, %v165
    %vm168 = vc.u32 %v166, %v162
    %v169 = vsel %vm168, 1, 0
    %v170 = vadd.s32 %v166, %v162
    %v171 = vadd.s32 %v167, %v169
    %v172 = vadd.s32 %v171, %v161
    %v173 = vadd.s32 %v172, %v163
    %v174 = vand.u32 %v151, 65535
    %v175 = vshrl.u32 %v151, 16
    %v176 = vand.u32 %v146, 65535
    %v177 = vshrl.u32 %v146, 16
    %v178 = vmul.u32 %v174, %v176
    %v179 = vmul.u32 %v174, %v177
    %v180 = vmul.u32 %v175, %v176
    %v181 = vmul.u32 %v175, %v177
    %v182 = vshll.u32 %v179, 16
    %v183 = vshrl.u32 %v179, 16
    %v184 = vshll.u32 %v180, 16
    %v185 = vshrl.u32 %v180, 16
    %vm186 = vc.u32 %v178, %v182
    %v187 = vsel %vm186, 1, 0
    %v188 = vadd.s32 %v178, %v182
    %v189 = vadd.s32 %v181, %v187
    %vm190 = vc.u32 %v188, %v184
    %v191 = vsel %vm190, 1, 0
    %v192 = vadd.s32 %v188, %v184
    %v193 = vadd.s32 %v189, %v191
    %v194 = vadd.s32 %v193, %v183
    %v195 = vadd.s32 %v194, %v185
    %v196 = vmul.u32 %v151, %v142
    %v197 = vadd.s32 %v173, %v192
    %vm198 = vc.u32 %v173, %v192
    %v199 = vadd.s32 %v195, 1
    %v200 = vsel %vm198, %v199, %v195
    %v201 = vadd.s32 %v196, %v200
    %v202 = vadd.s32 %v201, 536870912
    %v203 = vshrl.u32 %v202, 30
    %v204 = vshll.u32 %v203, 30
    %v205 = vsub.s32 %v201, %v204
    %vm206 = vcmp.lt.s32.totalorder %v205, 0
    %v207 = vsub.s32 0, %v205
    %v208 = vsel %vm206, %v207, %v205
    %v209 = vclz %v208
    %v210 = vsub.s32 %v209, 2
    %vm211 = vcmp.gt.s32.totalorder 0, %v210
    %v212 = vsel %vm211, 0, %v210
    %v213 = vsub.s32 32, %v212
    %v214 = vshll.u32 %v205, %v212
    %v215 = vshrl.u32 %v197, %v213
    %v216 = vor.u32 %v214, %v215
    %v217 = vsub.s32 4294967266, %v212
    %v218 = vadd.s32 %v217, 127
    %v219 = vshll.u32 %v218, 23
    %v220 = vor.u32 4788187, %v219
    %v221 = vand.u32 2147483647, %v220
    %v223 = vcvt.s32.f32 %v216
    %v224 = vmul.f32 %v223, %v221
    %v225 = vxor.u32 %v224, 2147483648
    %v226 = vsel %vm105, %v225, %v224
    %v227 = vsub.s32 4, %v203
    %v228 = vsel %vm105, %v227, %v203
    %v229 = vsel %vm104, %v102, %v226
    %v230 = vsel %vm104, 0, %v228
    %v231 = vmul.f32 %v229, %v229
    %v232 = vmul.f32 %v231, -0.001358992
    %v233 = vadd.f32 %v232, 0.041655596
    %v234 = vmul.f32 %v231, %v233
    %v235 = vadd.f32 %v234, -0.4999988
    %v236 = vmul.f32 %v231, %v235
    %v237 = vadd.f32 1.0, %v236
    %v238 = vmul.f32 %v229, %v229
    %v239 = vmul.f32 %v238, -0.00019511016
    %v240 = vadd.f32 %v239, 0.008332121
    %v241 = vmul.f32 %v238, %v240
    %v242 = vadd.f32 %v241, -0.16666654
    %v243 = vmul.f32 %v238, %v242
    %v244 = vadd.f32 %v243, 1.0
    %v245 = vmul.f32 %v244, %v229
    %vm246 = vweird.f32 %v102
    %v247 = vand.u32 %v230, 3
    %vm248 = vcmp.lt.s32.totalorder %v247, 2
    %vm249 = vcmp.eq.s32.totalorder %v247, 0
    %v250 = vxor.u32 %v245, 2147483648
    %v251 = vsel %vm249, %v237, %v250
    %vm252 = vcmp.eq.s32.totalorder %v247, 2
    %v253 = vxor.u32 %v237, 2147483648
    %v254 = vsel %vm252, %v253, %v245
    %v255 = vsel %vm248, %v251, %v254
    %v256 = vsel %vm246, nan, %v255
    %v257 = vsub.f32 1.0, %v256
    %vm258 = vcmask 62464
    %v259 = vsel %vm258, %v257, 0.0
    %v260 = vrot.slane %v259, 4
    %v261 = vadd.f32 %v259, %v260
    %v262 = vrot.slane %v261, 2
    %v263 = vadd.f32 %v261, %v262
    %v264 = vrot.slane %v263, 1
    %v265 = vadd.f32 %v263, %v264
    %v266 = vadd.f32 %v265, 1.0
    %v267 = vsel %vm258, %v97, 0.0
    %v268 = vrot.slane %v267, 4
    %v269 = vadd.f32 %v267, %v268
    %v270 = vrot.slane %v269, 2
    %v271 = vadd.f32 %v269, %v270
    %v272 = vrot.slane %v271, 1
    %v273 = vadd.f32 %v271, %v272
    %v274 = vadd.f32 %v273, 1.0
    %v275 = vmul.f32 %v266, %v274
    %v276 = vsel %vm94, %v275, 0.0
    %v277 = vld [vmem:[#allocation5] sm:$0xff]
    %v278 = vld [vmem:[#allocation5 + $0x8] sm:$0xff]
    %v279 = vld [vmem:[#allocation7] sm:$0xff]
    %v280 = vld [vmem:[#allocation7 + $0x8] sm:$0xff]
    %v281 = vsub.f32 %v277, %v279
    %v282 = vsub.f32 %v278, %v280
    %v283 = vand.u32 2147483647, %v281
    %v284 = vand.u32 2147483647, %v282
    %vm285 = vcmp.lt.f32.partialorder %v283, 10.0
    %vm286 = vcmp.lt.f32.partialorder %v284, 10.0
    %v287 = vmul.f32 %v283, 0.5
    %v288 = vmul.f32 %v284, 0.5
    %v289 = vadd.f32 %v287, 1.0
    %v290 = vadd.f32 %v288, 1.0
    %v291 = vlog2.pop %v289
    %v292 = vmul.f32 %v291, 0.6931472
    %v293 = vlog2.pop %v290
    %v294 = vmul.f32 %v293, 0.6931472
    %v295 = vmul.f32 %v292, 10.0
    %v296 = vmul.f32 %v294, 10.0
    %v297 = vsub.f32 %v283, -7.917595
    %v298 = vsub.f32 %v284, -7.917595
    %v299 = vsel %vm285, %v295, %v297
    %v300 = vsel %vm286, %v296, %v298
    %v301 = vsel %vm90, 1, 0
    %vm302 = vcmp.eq.s32.totalorder %v301, 1
    %v303 = vsel %vm302, %v299, 0.0
    %v304 = vsel %vm302, %v300, 0.0
    %vm305 = vcmask 1040384
    %v306 = vsel %vm305, %v276, %v96
    %vm307 = vcmask 64512
    %v309 = vsel %vm307, %v306, 0
    %311 = vmatpush.msra.mxu0 0.0
    %312 = vmatpush.msra.mxu0 0.0
    %313 = vmatpush.msra.mxu0 0.0
    %314 = vmatpush.msra.mxu0 0.0
    %315 = vmatpush.msra.mxu0 0.0
    %316 = vmatpush.msra.mxu0 0.0
    %317 = vmatpush.msra.mxu0 0.0
    %318 = vmatpush.msra.mxu0 0.0
    %319 = vmatpush.msra.mxu0 0.0
    %320 = vmatpush.msra.mxu0 0.0
    %321 = vmatpush.msra.mxu0 0.0
    %322 = vmatpush.msra.mxu0 0.0
    %323 = vmatpush.msra.mxu0 0.0
    %324 = vmatpush.msra.mxu0 0.0
    %325 = vmatpush.msra.mxu0 0.0
    %326 = vmatpush.msra.mxu0 %v303
    %327 = vmatmul.f32.gmra.mxu0 %v309
    %v328 = vpop.f32.mrf.mxu0
    %v329 = vadd.f32 0.0, %v328
    %330 = vdwg.mxu0
    %331 = vmatpush.msra.mxu0 0.0
    %332 = vmatpush.msra.mxu0 0.0
    %333 = vmatpush.msra.mxu0 0.0
    %334 = vmatpush.msra.mxu0 0.0
    %335 = vmatpush.msra.mxu0 0.0
    %336 = vmatpush.msra.mxu0 0.0
    %337 = vmatpush.msra.mxu0 0.0
    %338 = vmatpush.msra.mxu0 0.0
    %339 = vmatpush.msra.mxu0 0.0
    %340 = vmatpush.msra.mxu0 0.0
    %341 = vmatpush.msra.mxu0 0.0
    %342 = vmatpush.msra.mxu0 0.0
    %343 = vmatpush.msra.mxu0 0.0
    %344 = vmatpush.msra.mxu0 0.0
    %345 = vmatpush.msra.mxu0 0.0
    %346 = vmatpush.msra.mxu0 %v304
    %347 = vmatmul.f32.gmra.mxu0 %v309
    %v348 = vpop.f32.mrf.mxu0
    %v349 = vadd.f32 0.0, %v348
    %350 = vdwg.mxu0
    %vm351 = vcmask 1041408
    %v352 = vsel %vm351, %v329, 0.0
    %vm353 = vcmask 549888
    %v354 = vsel %vm353, %v349, 0.0
    %v355 = vadd.f32 %v352, %v354
    %356 = vadd.xlane.f32.xlu0 %v355
    %v357 = vpop.xlane.xlu0 %356
    %v358 = vsel %vm94, %v266, 0.0
    %vm359 = vcmask 57344
    %v360 = vsel %vm359, %v358, 0.0
    %361 = vadd.xlane.f32.xlu0 %v360
    %v362 = vpop.xlane.xlu0 %361
    %v363 = vrot.slane %v362, 4
    %v364 = vadd.f32 %v362, %v363
    %v365 = vrot.slane %v364, 2
    %v366 = vadd.f32 %v364, %v365
    %v367 = vrot.slane %v366, 1
    %v368 = vadd.f32 %v366, %v367
    %s369 = vtos %v368
    %vm370 = vcmp.eq.s32.totalorder %v92, 0
    %vm371 = vcmp.eq.s32.totalorder %v92, 1
    %vm372 = vcmp.eq.s32.totalorder %v92, 2
    %v373 = vstv %s369
    %v374 = vsel %vm372, %v373, 0.0
    %v375 = vsel %vm371, %v357, %v374
    %v377 = vrot.slane %v375, 1
    %v379 = vsel %vm370, %v357, %v377
    %p380 = scmp.eq.s32.totalorder 0, 0
    // Predicated region
    $region26: #{tpu_custom_call.1} parent=1 // pred_check
      %p381 = pneg %p380
    $region27: #{tpu_custom_call.1} parent=1 // pred_check_branch
      %383 = sbr.rel (%p381) target = $region29
    $region28: #{tpu_custom_call.1} parent=1 // pred_region
      %384 = vst [vmem:[#allocation8] sm:$0x1] 0.0
    $region29: #{tpu_custom_call.1} parent=1 // pred_fallthru
      _
    %v385 = vld [vmem:[#allocation8] sm:$0x1]
    %v386 = vadd.f32 %v385, %v379
    %387 = vst [vmem:[#allocation8] sm:$0x1] %v386
    // Predicated region
    $region30: #{tpu_custom_call.1} parent=1 // pred_check
      _
    $region31: #{tpu_custom_call.1} parent=1 // pred_check_branch
      %389 = sbr.rel (0) target = $region33
    $region32: #{tpu_custom_call.1} parent=1 // pred_region
      %391 = vsyncadd [#allocation4], 0
      %s393 = sshll.u32 [#allocation8], 4
      %s394 = int_to_ptr.vmem [resolvable:$true] %s393
      %s395 = sshll.u32 %s3, 4
      %s396 = int_to_ptr.hbm [resolvable:$true] %s395
      %398 = dma.vmem_to_hbm [thread:$0]  %s394, 16, %s396, [#allocation4]
    $region33: #{tpu_custom_call.1} parent=1 // pred_fallthru
      _
    // Predicated region
    $region34: #{tpu_custom_call.1} parent=1 // pred_check
      _
    $region35: #{tpu_custom_call.1} parent=1 // pred_check_branch
      %400 = sbr.rel (0) target = $region37
    $region36: #{tpu_custom_call.1} parent=1 // pred_region
      %402 = dma.done [#allocation4], 16
    $region37: #{tpu_custom_call.1} parent=1 // pred_fallthru
      _
    %403 = vsyncpa [#allocation3], 1
    %404 = vsyncpa [#allocation6], 1
    %405 = vsyncpa [#allocation4], 1

</llo_original>
